<compile_context>
chip_gen: v5e
topology: v5e:2x2
jax: 0.10.0
libtpu: 0.0.40
codegen_flags: <defaults>
</compile_context>

<pallas_src>
import jax
import jax.numpy as jnp
from jax.experimental import pallas as pl
from jax.experimental.pallas import tpu as pltpu

EMBED_DIM = 25
HIDDEN_DIM = 32


def _round_up(x, m):
    return ((x + m - 1) // m) * m


def _model_kernel(ids_ref, tnz_ref, w1_ref, b1_ref, w2r_ref, b2_ref, out_ref):
    TB, L = ids_ref.shape            # batch tile, sequence length (static)
    V1, twoE = tnz_ref.shape         # vocab+1, 2*embed_dim (static)
    E = twoE // 2

    # ---- per-row token histogram: hist[b, v] = #{l : ids[b, l] == v} -------
    # Accumulate in int32 (boolean adds, no per-step f32 convert on the VALU);
    # cast to f32 exactly once right before the MXU dot.
    ids = ids_ref[...]                                            # (TB, L) int32
    vocab_iota = jax.lax.broadcasted_iota(jnp.int32, (TB, V1), 1)
    hist_i = jnp.zeros((TB, V1), jnp.int32)
    if L <= 32:
        # Small static L: full unroll (static lane slices, VPU compares/adds).
        for l in range(L):
            tok = ids[:, l:l + 1]                                 # (TB, 1)
            hist_i = hist_i + (tok == vocab_iota).astype(jnp.int32)
    else:
        # Long sequences: fori_loop bounds vreg live ranges and compile time.
        def _body(l, acc):
            tok = jax.lax.dynamic_slice_in_dim(ids, l, 1, axis=1)
            return acc + (tok == vocab_iota).astype(jnp.int32)
        hist_i = jax.lax.fori_loop(0, L, _body, hist_i, unroll=4)
    hist = hist_i.astype(jnp.float32)                             # (TB, V1)

    # ---- masked sum & count over the sequence axis as ONE fused matmul -----
    #   tnz = [table | (table != 0)]  (precomputed once in the wrapper)
    #   sc[:, :E] = hist @ table       = masked sum of embedded values
    #   sc[:, E:] = hist @ (table!=0)  = per-element nonzero count
    # Exactly the reference per-element (e != 0) mask semantics; the `e*mask`
    # multiply in the PyTorch forward is an identity and is omitted.
    sc = jnp.dot(hist, tnz_ref[...], preferred_element_type=jnp.float32)
    s = sc[:, :E]                                                 # (TB, E)
    c = sc[:, E:]                                                 # (TB, E)

    # mean = sum / clamp(count, 1) — exact division (count is a small integer;
    # the divide is tiny and exactness keeps tight parity with the reference).
    x = s / jnp.maximum(c, 1.0)                                   # (TB, E)

    # ---- linear1 + ReLU ------------------------------------------------------
    h = jnp.dot(x, w1_ref[...], preferred_element_type=jnp.float32) + b1_ref[...]
    h = jnp.maximum(h, 0.0)                                       # (TB, H)

    # Dropout(p=0.3) is identity at inference time (module.eval()).
    # TODO(synk): training-mode dropout (stochastic masking) not implemented.

    # ---- linear2 (out_features=1) + sigmoid ----------------------------------
    # Avoid a 1-lane MXU matmul: VPU multiply + lane reduction.  b2 is a
    # scalar read from SMEM.  The result is stored lane-dense as a (1, 1, TB)
    # block (unmasked stores / dense output DMA) instead of a masked (TB, 1)
    # column of 1-lane vst.msk stores.
    y = jnp.sum(h * w2r_ref[...], axis=-1) + b2_ref[0]            # (TB,)
    out_ref[...] = jax.nn.sigmoid(y).reshape(1, 1, TB)


def model_forward(x_ids, emb_table, w1, b1, w2, b2):
    """x_ids: (B, L) int token ids. Returns (B, 1) float32 probabilities."""
    B, L = x_ids.shape
    V1, E = emb_table.shape
    H = w1.shape[1]

    # The histogram formulation keeps O(TB*V1) live state and is only intended
    # for small vocabularies.
    # TODO(synk): for realistic (large) vocabularies switch to a
    # scalar-prefetch / manual-DMA row-gather formulation (O(B*L*E)).
    assert V1 <= 4096, "histogram formulation only intended for small vocabularies"

    # Batch tile selection:
    #  * large batches:    TB = 256 (amortizes ~0.35 us/step grid overhead),
    #  * moderate batches: split into >= 2 tiles so ("parallel",) semantics
    #    can shard across both v7x TensorCores,
    #  * tiny batches:     one sublane-aligned tile.
    if B >= 512:
        TB = 256
    elif B >= 16:
        TB = _round_up(pl.cdiv(B, 2), 8)
    else:
        TB = _round_up(B, 8)
    Bp = _round_up(B, TB)

    ids = x_ids.astype(jnp.int32)
    if Bp != B:
        # Pad with token 0 (padding_idx).  Padded rows produce finite values
        # (sigmoid(relu(b1) @ w2 + b2)) and are sliced off below.
        ids = jnp.pad(ids, ((0, Bp - B), (0, 0)))

    # Fused resident operand [table | (table != 0)], computed once by XLA so
    # the kernel does a single MXU dot instead of two plus an in-kernel mask.
    tnz = jnp.concatenate(
        [emb_table, (emb_table != 0.0).astype(emb_table.dtype)], axis=1)  # (V1, 2E)

    n_tiles = Bp // TB

    def _resident(shape):
        # Constant block index -> single-buffered (second pipeline buffer is
        # pure VMEM waste for operands that never change).
        nd = len(shape)
        return pl.BlockSpec(shape, lambda *_: (0,) * nd,
                            pipeline_mode=pl.Buffered(1))

    out = pl.pallas_call(
        _model_kernel,
        out_shape=jax.ShapeDtypeStruct((n_tiles, 1, TB), jnp.float32),
        grid=(n_tiles,),
        in_specs=[
            pl.BlockSpec((TB, L), lambda i: (i, 0)),          # ids: batch-tiled, pipelined
            _resident((V1, 2 * E)),                           # fused [table | nz]
            _resident((E, H)),                                # w1
            _resident((1, H)),                                # b1 (row)
            _resident((1, H)),                                # w2 (as row)
            pl.BlockSpec(memory_space=pltpu.MemorySpace.SMEM),  # b2: scalar in SMEM
        ],
        out_specs=pl.BlockSpec((1, 1, TB), lambda i: (i, 0, 0)),  # lane-dense output
        compiler_params=pltpu.CompilerParams(
            dimension_semantics=("parallel",),                # shard batch tiles over TCs
            vmem_limit_bytes=32 * 1024 * 1024,                # portable v5e/v6e/v7x
        ),
    )(ids, tnz, w1, b1.reshape(1, H), w2.reshape(1, H), b2)

    return out.reshape(Bp, 1)[:B]


def init_params(key, num_vocab):
    """Deterministic synthetic parameters matching the PyTorch module shapes."""
    k_emb, k_w1, k_b1, k_w2, k_b2 = jax.random.split(key, 5)

    # nn.Embedding(num_vocab + 1, embed_dim, padding_idx=0): row 0 zeroed.
    emb_table = jax.random.normal(k_emb, (num_vocab + 1, EMBED_DIM), jnp.float32)
    emb_table = emb_table.at[0].set(0.0)

    # nn.Linear(embed_dim, hidden_dim): stored as (in, out) for x @ W.
    lim1 = 1.0 / jnp.sqrt(EMBED_DIM)
    w1 = jax.random.uniform(k_w1, (EMBED_DIM, HIDDEN_DIM), jnp.float32, -lim1, lim1)
    b1 = jax.random.uniform(k_b1, (HIDDEN_DIM,), jnp.float32, -lim1, lim1)

    # nn.Linear(hidden_dim, 1)
    lim2 = 1.0 / jnp.sqrt(HIDDEN_DIM)
    w2 = jax.random.uniform(k_w2, (HIDDEN_DIM, 1), jnp.float32, -lim2, lim2)
    b2 = jax.random.uniform(k_b2, (1,), jnp.float32, -lim2, lim2)

    return emb_table, w1, b1, w2, b2


def reference_forward(x_ids, emb_table, w1, b1, w2, b2):
    """Pure-JAX reference mirroring the torch forward (eval mode).

    Note: mirrors the PyTorch module exactly — the mask is computed on the
    embedded VALUES (x != 0), not on the token ids.
    """
    e = jnp.take(emb_table, x_ids, axis=0)
    mask = (e != 0.0).astype(jnp.float32)
    s = jnp.sum(e * mask, axis=1)
    c = jnp.sum(mask, axis=1)
    x = s / jnp.maximum(c, 1.0)
    h = jnp.maximum(x @ w1 + b1, 0.0)
    y = h @ w2 + b2
    return jax.nn.sigmoid(y)


if __name__ == "__main__":
    num_vocab = 50
    B, L = 8, 8

    key = jax.random.PRNGKey(0)
    k_params, k_ids = jax.random.split(key)
    params = init_params(k_params, num_vocab)

    # Token ids in [0, num_vocab]; include some padding (id 0) tokens.
    x_ids = jax.random.randint(k_ids, (B, L), 0, num_vocab + 1, dtype=jnp.int32)
    x_ids = x_ids.at[:, -2:].set(0)  # force some padding at the tail

    out = model_forward(x_ids, *params)
    out = jax.block_until_ready(out)

    ref = reference_forward(x_ids, *params)
    assert out.shape == (B, 1)
    # Exact division (no approx reciprocal) restores near-bit parity; the
    # remaining slack only covers MXU f32 multi-pass rounding differences
    # between the histogram-matmul and the gather-sum reference.
    assert jnp.allclose(out, ref, atol=5e-5, rtol=5e-5), (out, ref)

    print("KERNEL_OK")
</pallas_src>

<mosaic_0001>
module attributes {stable_mosaic.version = 11 : i64} {
  func.func @_model_kernel(%arg0: i32, %arg1: memref<8x8xi32, #tpu.memory_space<vmem>>, %arg2: memref<51x50xf32, #tpu.memory_space<vmem>>, %arg3: memref<25x32xf32, #tpu.memory_space<vmem>>, %arg4: memref<1x32xf32, #tpu.memory_space<vmem>>, %arg5: memref<1x32xf32, #tpu.memory_space<vmem>>, %arg6: memref<1xf32, #tpu.memory_space<smem>>, %arg7: memref<1x1x8xf32, #tpu.memory_space<vmem>>) attributes {dimension_semantics = [#tpu.dimension_semantics<parallel>], iteration_bounds = array<i64: 1>, scalar_prefetch = 0 : i64, scratch_operands = 0 : i64, tpu.core_type = #tpu.core_type<tc>, window_params = [{transform_indices = @transform_0, window_bounds = array<i64: 8, 8>}, {pipeline_mode = #tpu.pipeline_mode<synchronous>, transform_indices = @transform_1, window_bounds = array<i64: 51, 50>}, {pipeline_mode = #tpu.pipeline_mode<synchronous>, transform_indices = @transform_2, window_bounds = array<i64: 25, 32>}, {pipeline_mode = #tpu.pipeline_mode<synchronous>, transform_indices = @transform_3, window_bounds = array<i64: 1, 32>}, {pipeline_mode = #tpu.pipeline_mode<synchronous>, transform_indices = @transform_4, window_bounds = array<i64: 1, 32>}, {transform_indices = @transform_5, window_bounds = array<i64: 1>}, {transform_indices = @transform_6, window_bounds = array<i64: 1, 1, 8>}]} {
    %c0 = arith.constant 0 : index
    %c0_0 = arith.constant 0 : index
    %0 = vector.load %arg1[%c0, %c0_0] : memref<8x8xi32, #tpu.memory_space<vmem>>, vector<8x8xi32>
    %1 = tpu.iota {dimensions = array<i32: 1>} : vector<8x51xi32>
    %c0_i32 = arith.constant 0 : i32
    %2 = vector.broadcast %c0_i32 : i32 to vector<8x51xi32>
    %3 = vector.extract_strided_slice %0 {offsets = [0, 0], sizes = [8, 1], strides = [1, 1]} : vector<8x8xi32> to vector<8x1xi32>
    %4 = vector.broadcast %3 : vector<8x1xi32> to vector<8x51xi32>
    %5 = arith.cmpi eq, %4, %1 : vector<8x51xi32>
    %6 = arith.extui %5 : vector<8x51xi1> to vector<8x51xi32>
    %7 = arith.addi %2, %6 : vector<8x51xi32>
    %8 = vector.extract_strided_slice %0 {offsets = [0, 1], sizes = [8, 1], strides = [1, 1]} : vector<8x8xi32> to vector<8x1xi32>
    %9 = vector.broadcast %8 : vector<8x1xi32> to vector<8x51xi32>
    %10 = arith.cmpi eq, %9, %1 : vector<8x51xi32>
    %11 = arith.extui %10 : vector<8x51xi1> to vector<8x51xi32>
    %12 = arith.addi %7, %11 : vector<8x51xi32>
    %13 = vector.extract_strided_slice %0 {offsets = [0, 2], sizes = [8, 1], strides = [1, 1]} : vector<8x8xi32> to vector<8x1xi32>
    %14 = vector.broadcast %13 : vector<8x1xi32> to vector<8x51xi32>
    %15 = arith.cmpi eq, %14, %1 : vector<8x51xi32>
    %16 = arith.extui %15 : vector<8x51xi1> to vector<8x51xi32>
    %17 = arith.addi %12, %16 : vector<8x51xi32>
    %18 = vector.extract_strided_slice %0 {offsets = [0, 3], sizes = [8, 1], strides = [1, 1]} : vector<8x8xi32> to vector<8x1xi32>
    %19 = vector.broadcast %18 : vector<8x1xi32> to vector<8x51xi32>
    %20 = arith.cmpi eq, %19, %1 : vector<8x51xi32>
    %21 = arith.extui %20 : vector<8x51xi1> to vector<8x51xi32>
    %22 = arith.addi %17, %21 : vector<8x51xi32>
    %23 = vector.extract_strided_slice %0 {offsets = [0, 4], sizes = [8, 1], strides = [1, 1]} : vector<8x8xi32> to vector<8x1xi32>
    %24 = vector.broadcast %23 : vector<8x1xi32> to vector<8x51xi32>
    %25 = arith.cmpi eq, %24, %1 : vector<8x51xi32>
    %26 = arith.extui %25 : vector<8x51xi1> to vector<8x51xi32>
    %27 = arith.addi %22, %26 : vector<8x51xi32>
    %28 = vector.extract_strided_slice %0 {offsets = [0, 5], sizes = [8, 1], strides = [1, 1]} : vector<8x8xi32> to vector<8x1xi32>
    %29 = vector.broadcast %28 : vector<8x1xi32> to vector<8x51xi32>
    %30 = arith.cmpi eq, %29, %1 : vector<8x51xi32>
    %31 = arith.extui %30 : vector<8x51xi1> to vector<8x51xi32>
    %32 = arith.addi %27, %31 : vector<8x51xi32>
    %33 = vector.extract_strided_slice %0 {offsets = [0, 6], sizes = [8, 1], strides = [1, 1]} : vector<8x8xi32> to vector<8x1xi32>
    %34 = vector.broadcast %33 : vector<8x1xi32> to vector<8x51xi32>
    %35 = arith.cmpi eq, %34, %1 : vector<8x51xi32>
    %36 = arith.extui %35 : vector<8x51xi1> to vector<8x51xi32>
    %37 = arith.addi %32, %36 : vector<8x51xi32>
    %38 = vector.extract_strided_slice %0 {offsets = [0, 7], sizes = [8, 1], strides = [1, 1]} : vector<8x8xi32> to vector<8x1xi32>
    %39 = vector.broadcast %38 : vector<8x1xi32> to vector<8x51xi32>
    %40 = arith.cmpi eq, %39, %1 : vector<8x51xi32>
    %41 = arith.extui %40 : vector<8x51xi1> to vector<8x51xi32>
    %42 = arith.addi %37, %41 : vector<8x51xi32>
    %43 = arith.sitofp %42 : vector<8x51xi32> to vector<8x51xf32>
    %c0_1 = arith.constant 0 : index
    %c0_2 = arith.constant 0 : index
    %44 = vector.load %arg2[%c0_1, %c0_2] : memref<51x50xf32, #tpu.memory_space<vmem>>, vector<51x50xf32>
    %cst = arith.constant dense<0.000000e+00> : vector<8x50xf32>
    %45 = tpu.matmul %43, %44, %cst {dimension_numbers = #tpu.dot_dimension_numbers<[1], [0], [0], [1], [0, 0, 1, 1], [], []>} : vector<8x51xf32>, vector<51x50xf32>, vector<8x50xf32> -> vector<8x50xf32>
    %46 = vector.extract_strided_slice %45 {offsets = [0, 0], sizes = [8, 25], strides = [1, 1]} : vector<8x50xf32> to vector<8x25xf32>
    %47 = vector.extract_strided_slice %45 {offsets = [0, 25], sizes = [8, 25], strides = [1, 1]} : vector<8x50xf32> to vector<8x25xf32>
    %cst_3 = arith.constant 1.000000e+00 : f32
    %48 = vector.broadcast %cst_3 : f32 to vector<8x25xf32>
    %49 = arith.maximumf %47, %48 : vector<8x25xf32>
    %50 = arith.divf %46, %49 : vector<8x25xf32>
    %c0_4 = arith.constant 0 : index
    %c0_5 = arith.constant 0 : index
    %51 = vector.load %arg3[%c0_4, %c0_5] : memref<25x32xf32, #tpu.memory_space<vmem>>, vector<25x32xf32>
    %cst_6 = arith.constant dense<0.000000e+00> : vector<8x32xf32>
    %52 = tpu.matmul %50, %51, %cst_6 {dimension_numbers = #tpu.dot_dimension_numbers<[1], [0], [0], [1], [0, 0, 1, 1], [], []>} : vector<8x25xf32>, vector<25x32xf32>, vector<8x32xf32> -> vector<8x32xf32>
    %c0_7 = arith.constant 0 : index
    %c0_8 = arith.constant 0 : index
    %53 = vector.load %arg4[%c0_7, %c0_8] : memref<1x32xf32, #tpu.memory_space<vmem>>, vector<1x32xf32>
    %54 = vector.broadcast %53 : vector<1x32xf32> to vector<8x32xf32>
    %55 = arith.addf %52, %54 : vector<8x32xf32>
    %cst_9 = arith.constant 0.000000e+00 : f32
    %56 = vector.broadcast %cst_9 : f32 to vector<8x32xf32>
    %57 = arith.maximumf %55, %56 : vector<8x32xf32>
    %c0_10 = arith.constant 0 : index
    %c0_11 = arith.constant 0 : index
    %58 = vector.load %arg5[%c0_10, %c0_11] : memref<1x32xf32, #tpu.memory_space<vmem>>, vector<1x32xf32>
    %59 = vector.broadcast %58 : vector<1x32xf32> to vector<8x32xf32>
    %60 = arith.mulf %57, %59 : vector<8x32xf32>
    %cst_12 = arith.constant dense<0.000000e+00> : vector<8xf32>
    %61 = vector.multi_reduction <add>, %60, %cst_12 [1] : vector<8x32xf32> to vector<8xf32>
    %c0_13 = arith.constant 0 : index
    %62 = memref.load %arg6[%c0_13] : memref<1xf32, #tpu.memory_space<smem>>
    %63 = vector.broadcast %62 : f32 to vector<8xf32>
    %64 = arith.addf %61, %63 : vector<8xf32>
    %65 = arith.negf %64 : vector<8xf32>
    %66 = math.exp %65 : vector<8xf32>
    %cst_14 = arith.constant 1.000000e+00 : f32
    %67 = vector.broadcast %cst_14 : f32 to vector<8xf32>
    %68 = arith.addf %67, %66 : vector<8xf32>
    %69 = arith.divf %67, %68 : vector<8xf32>
    %70 = vector.shape_cast %69 : vector<8xf32> to vector<1x1x8xf32>
    %c0_15 = arith.constant 0 : index
    %c0_16 = arith.constant 0 : index
    %c0_17 = arith.constant 0 : index
    %71 = vector.load %arg7[%c0_15, %c0_16, %c0_17] : memref<1x1x8xf32, #tpu.memory_space<vmem>>, vector<1x1x8xf32>
    tpu.vector_store %arg7[%c0_15, %c0_16, %c0_17], %70 {strides = array<i32>} : memref<1x1x8xf32, #tpu.memory_space<vmem>>, vector<1x1x8xf32>,
    return
  }
  func.func @transform_0(%arg0: i32) -> (i32, i32) {
    %c0_i32 = arith.constant 0 : i32
    %c0_i32_0 = arith.constant 0 : i32
    return %arg0, %c0_i32 : i32, i32
  }
  func.func @transform_1(%arg0: i32) -> (i32, i32) {
    %c0_i32 = arith.constant 0 : i32
    %c0_i32_0 = arith.constant 0 : i32
    %c0_i32_1 = arith.constant 0 : i32
    return %c0_i32, %c0_i32_0 : i32, i32
  }
  func.func @transform_2(%arg0: i32) -> (i32, i32) {
    %c0_i32 = arith.constant 0 : i32
    %c0_i32_0 = arith.constant 0 : i32
    %c0_i32_1 = arith.constant 0 : i32
    return %c0_i32, %c0_i32_0 : i32, i32
  }
  func.func @transform_3(%arg0: i32) -> (i32, i32) {
    %c0_i32 = arith.constant 0 : i32
    %c0_i32_0 = arith.constant 0 : i32
    %c0_i32_1 = arith.constant 0 : i32
    return %c0_i32, %c0_i32_0 : i32, i32
  }
  func.func @transform_4(%arg0: i32) -> (i32, i32) {
    %c0_i32 = arith.constant 0 : i32
    %c0_i32_0 = arith.constant 0 : i32
    %c0_i32_1 = arith.constant 0 : i32
    return %c0_i32, %c0_i32_0 : i32, i32
  }
  func.func @transform_5(%arg0: i32) -> i32 {
    %c0_i32 = arith.constant 0 : i32
    %c0_i32_0 = arith.constant 0 : i32
    return %c0_i32 : i32
  }
  func.func @transform_6(%arg0: i32) -> (i32, i32, i32) {
    %c0_i32 = arith.constant 0 : i32
    %c0_i32_0 = arith.constant 0 : i32
    %c0_i32_1 = arith.constant 0 : i32
    return %arg0, %c0_i32, %c0_i32_0 : i32, i32, i32
  }
}

</mosaic_0001>

<llo_original>
// kernel: tpu_custom_call.1
$region0: #{tpu_custom_call.1}
  #allocation0 [shape = 'u32[]', space=smem, size = 0x4, offset = 0x4, fixed_abs, tag = 'smem constant byte address 0x4 - core index']
  #allocation1 [shape = 'u32[72,128]{1,0:T(1,128)}', space=vmem, size = 0x9000, scoped, tag = 'internal scratch']
  #allocation2 [shape = 'f32[1]{0:T(128)S(6)}', space=smem, size = 0x200, scoped, tag = 'scoped memory for tpu_custom_call.1']
  %s0 = inlined_call_operand.hbm [shape: s32[8,8], index: 0, kind: input, shape index: {}]
  %s1 = inlined_call_operand.hbm [shape: f32[51,50], index: 1, kind: input, shape index: {}]
  %s2 = inlined_call_operand.hbm [shape: f32[25,32], index: 2, kind: input, shape index: {}]
  %s3 = inlined_call_operand.vmem [shape: f32[1,32], index: 3, kind: input, shape index: {}]
  %s4 = inlined_call_operand.vmem [shape: f32[1,32], index: 4, kind: input, shape index: {}]
  %s5 = inlined_call_operand.<no memory space> [shape: f32[1], index: 5, kind: input, shape index: {}]
  %s6 = inlined_call_operand.hbm [shape: f32[1,1,8], index: 6, kind: output, shape index: {}]
  %s7 = sld [smem:[#allocation0]]
  $region46: #{tpu_custom_call.1} parent=0
    _
  %s9 = ssub.s32 1, %s7
  %s10 = scalar_select 0, %s9, %s7
  %11 = sst [smem:[#allocation2]] %s5
  $region1: #{tpu_custom_call.1} parent=0
    #allocation3 [shape = 'u8[4096]{0}', space=vmem, size = 0x1000, scoped, tag = 'input window, operand 0, single buffered']
    #allocation4 [shape = 's32[1]{0}', space=sflag, size = 0x4, scoped, tag = 'scoped memory for tpu_custom_call.1']
    #allocation5 [shape = 's32[1]{0}', space=sflag, size = 0x4, scoped, tag = 'scoped memory for tpu_custom_call.1']
    #allocation6 [shape = 'u8[28672]{0}', space=vmem, size = 0x7000, scoped, tag = 'input window, operand 1, single buffered']
    #allocation7 [shape = 's32[1]{0}', space=sflag, size = 0x4, scoped, tag = 'scoped memory for tpu_custom_call.1']
    #allocation8 [shape = 'u8[16384]{0}', space=vmem, size = 0x4000, scoped, tag = 'input window, operand 2, single buffered']
    #allocation9 [shape = 'u8[512]{0}', space=vmem, size = 0x400, scoped, tag = 'output window, operand 0, single buffered']
    %12 = vsyncpa [#allocation4], 0
    %13 = vsyncpa [#allocation7], 0
    %14 = vsyncpa [#allocation5], 0
    // Predicated region
    $region2: #{tpu_custom_call.1} parent=1 // pred_check
      _
    $region3: #{tpu_custom_call.1} parent=1 // pred_check_branch
      %16 = sbr.rel (0) target = $region5
    $region4: #{tpu_custom_call.1} parent=1 // pred_region
      %18 = vsyncadd [#allocation4], 0
      %s20 = sshll.u32 %s0, 4
      %s21 = int_to_ptr.hbm [resolvable:$true] %s20
      %s22 = sshll.u32 [#allocation3], 4
      %s23 = int_to_ptr.vmem [resolvable:$true] %s22
      %25 = dma.hbm_to_vmem [thread:$0]  %s21, 128, %s23, [#allocation4]
    $region5: #{tpu_custom_call.1} parent=1 // pred_fallthru
      _
    // Predicated region
    $region6: #{tpu_custom_call.1} parent=1 // pred_check
      _
    $region7: #{tpu_custom_call.1} parent=1 // pred_check_branch
      %27 = sbr.rel (0) target = $region9
    $region8: #{tpu_custom_call.1} parent=1 // pred_region
      %29 = vsyncadd [#allocation7], 0
      %s30 = sshll.u32 %s1, 4
      %s31 = int_to_ptr.hbm [resolvable:$true] %s30
      %s32 = sshll.u32 [#allocation6], 4
      %s33 = int_to_ptr.vmem [resolvable:$true] %s32
      %38 = dma.hbm_to_vmem [thread:$0]  %s31, 896, %s33, [#allocation7], 128, 128, 8
    $region9: #{tpu_custom_call.1} parent=1 // pred_fallthru
      _
    // Predicated region
    $region10: #{tpu_custom_call.1} parent=1 // pred_check
      _
    $region11: #{tpu_custom_call.1} parent=1 // pred_check_branch
      %40 = sbr.rel (0) target = $region13
    $region12: #{tpu_custom_call.1} parent=1 // pred_region
      %42 = vsyncadd [#allocation7], 0
      %s43 = sshll.u32 %s2, 4
      %s44 = int_to_ptr.hbm [resolvable:$true] %s43
      %s45 = sshll.u32 [#allocation8], 4
      %s46 = int_to_ptr.vmem [resolvable:$true] %s45
      %51 = dma.hbm_to_vmem [thread:$0]  %s44, 512, %s46, [#allocation7], 128, 128, 8
    $region13: #{tpu_custom_call.1} parent=1 // pred_fallthru
      _
    // Predicated region
    $region14: #{tpu_custom_call.1} parent=1 // pred_check
      _
    $region15: #{tpu_custom_call.1} parent=1 // pred_check_branch
      %53 = sbr.rel (0) target = $region17
    $region16: #{tpu_custom_call.1} parent=1 // pred_region
      _
    $region17: #{tpu_custom_call.1} parent=1 // pred_fallthru
      _
    // Predicated region
    $region18: #{tpu_custom_call.1} parent=1 // pred_check
      _
    $region19: #{tpu_custom_call.1} parent=1 // pred_check_branch
      %55 = sbr.rel (0) target = $region21
    $region20: #{tpu_custom_call.1} parent=1 // pred_region
      _
    $region21: #{tpu_custom_call.1} parent=1 // pred_fallthru
      _
    // Predicated region
    $region22: #{tpu_custom_call.1} parent=1 // pred_check
      _
    $region23: #{tpu_custom_call.1} parent=1 // pred_check_branch
      %57 = sbr.rel (0) target = $region25
    $region24: #{tpu_custom_call.1} parent=1 // pred_region
      _
    $region25: #{tpu_custom_call.1} parent=1 // pred_fallthru
      _
    // Predicated region
    $region26: #{tpu_custom_call.1} parent=1 // pred_check
      _
    $region27: #{tpu_custom_call.1} parent=1 // pred_check_branch
      %59 = sbr.rel (0) target = $region29
    $region28: #{tpu_custom_call.1} parent=1 // pred_region
      %61 = dma.done [#allocation4], 128
    $region29: #{tpu_custom_call.1} parent=1 // pred_fallthru
      _
    // Predicated region
    $region30: #{tpu_custom_call.1} parent=1 // pred_check
      _
    $region31: #{tpu_custom_call.1} parent=1 // pred_check_branch
      %63 = sbr.rel (0) target = $region33
    $region32: #{tpu_custom_call.1} parent=1 // pred_region
      %65 = dma.done [#allocation7], 896
    $region33: #{tpu_custom_call.1} parent=1 // pred_fallthru
      _
    // Predicated region
    $region34: #{tpu_custom_call.1} parent=1 // pred_check
      _
    $region35: #{tpu_custom_call.1} parent=1 // pred_check_branch
      %67 = sbr.rel (0) target = $region37
    $region36: #{tpu_custom_call.1} parent=1 // pred_region
      %69 = dma.done [#allocation7], 512
    $region37: #{tpu_custom_call.1} parent=1 // pred_fallthru
      _
    %v70 = vld [vmem:[#allocation3] sm:$0xff]
    %v71 = vlaneseq
    %v72 = vand.u32 %v71, 127
    %73 = vset.pattern.permute.xlu0 0
    %74 = vperm.xlu0 %73, %v70
    %v75 = vpop.permute.xlu0 %74
    %vm76 = vcmp.eq.s32.totalorder %v75, %v72
    %v77 = vsel %vm76, 1, 0
    %78 = vset.pattern.permute.xlu0 1
    %79 = vperm.xlu0 %78, %v70
    %v80 = vpop.permute.xlu0 %79
    %vm81 = vcmp.eq.s32.totalorder %v80, %v72
    %v82 = vsel %vm81, 1, 0
    %v83 = vadd.s32 %v77, %v82
    %84 = vset.pattern.permute.xlu0 2
    %85 = vperm.xlu0 %84, %v70
    %v86 = vpop.permute.xlu0 %85
    %vm87 = vcmp.eq.s32.totalorder %v86, %v72
    %v88 = vsel %vm87, 1, 0
    %v89 = vadd.s32 %v83, %v88
    %90 = vset.pattern.permute.xlu0 3
    %91 = vperm.xlu0 %90, %v70
    %v92 = vpop.permute.xlu0 %91
    %vm93 = vcmp.eq.s32.totalorder %v92, %v72
    %v94 = vsel %vm93, 1, 0
    %v95 = vadd.s32 %v89, %v94
    %96 = vset.pattern.permute.xlu0 4
    %97 = vperm.xlu0 %96, %v70
    %v98 = vpop.permute.xlu0 %97
    %vm99 = vcmp.eq.s32.totalorder %v98, %v72
    %v100 = vsel %vm99, 1, 0
    %v101 = vadd.s32 %v95, %v100
    %102 = vset.pattern.permute.xlu0 5
    %103 = vperm.xlu0 %102, %v70
    %v104 = vpop.permute.xlu0 %103
    %vm105 = vcmp.eq.s32.totalorder %v104, %v72
    %v106 = vsel %vm105, 1, 0
    %v107 = vadd.s32 %v101, %v106
    %108 = vset.pattern.permute.xlu0 6
    %109 = vperm.xlu0 %108, %v70
    %v110 = vpop.permute.xlu0 %109
    %vm111 = vcmp.eq.s32.totalorder %v110, %v72
    %v112 = vsel %vm111, 1, 0
    %v113 = vadd.s32 %v107, %v112
    %114 = vset.pattern.permute.xlu0 7
    %115 = vperm.xlu0 %114, %v70
    %v116 = vpop.permute.xlu0 %115
    %vm117 = vcmp.eq.s32.totalorder %v116, %v72
    %v118 = vsel %vm117, 1, 0
    %v119 = vadd.s32 %v113, %v118
    %v120 = vcvt.s32.f32 %v119
    %v121 = vld [vmem:[#allocation6] sm:$0xff]
    %v122 = vld [vmem:[#allocation6 + $0x8] sm:$0xff]
    %v123 = vld [vmem:[#allocation6 + $0x10] sm:$0xff]
    %v124 = vld [vmem:[#allocation6 + $0x18] sm:$0xff]
    %v125 = vld [vmem:[#allocation6 + $0x20] sm:$0xff]
    %v126 = vld [vmem:[#allocation6 + $0x28] sm:$0xff]
    %v127 = vld [vmem:[#allocation6 + $0x30] sm:$0x7]
    %vm128 = vcmask 416768
    %v130 = vsel %vm128, %v120, 0
    %vm132 = vcmask 1042432
    %v134 = vsel %vm132, %v127, 0
    %136 = vmatpush.msra.mxu0 0.0
    %137 = vmatpush.msra.mxu0 0.0
    %138 = vmatpush.msra.mxu0 0.0
    %139 = vmatpush.msra.mxu0 0.0
    %140 = vmatpush.msra.mxu0 0.0
    %141 = vmatpush.msra.mxu0 0.0
    %142 = vmatpush.msra.mxu0 0.0
    %143 = vmatpush.msra.mxu0 0.0
    %144 = vmatpush.msra.mxu0 0.0
    %145 = vmatpush.msra.mxu0 %v134
    %146 = vmatpush.msra.mxu0 %v126
    %147 = vmatpush.msra.mxu0 %v125
    %148 = vmatpush.msra.mxu0 %v124
    %149 = vmatpush.msra.mxu0 %v123
    %150 = vmatpush.msra.mxu0 %v122
    %151 = vmatpush.msra.mxu0 %v121
    %152 = vmatmul.f32.gmra.mxu0 %v130
    %v153 = vpop.f32.mrf.mxu0
    %v154 = vadd.f32 0.0, %v153
    %155 = vdwg.mxu0
    %v156 = vmax.f32 %v154, 1.0
    %158 = vrot.lane.b32.xlu0 %v156, 103
    %v159 = vpop.permute.xlu0 %158
    %v161 = vrcp.pop %v159
    %v162 = vmul.f32 %v159, %v161
    %v163 = vsub.f32 1.0, %v162
    %v164 = vmul.f32 %v161, %v163
    %v165 = vadd.f32 %v161, %v164
    %vm166 = vweird.f32 %v159
    %vm167 = vweird.f32 %v161
    %vm168 = vmor %vm166, %vm167
    %v169 = vsel %vm168, %v161, %v165
    %v170 = vand.u32 2147483647, %v159
    %vm171 = vcmp.eq.f32.partialorder %v170, 8.507059e+37
    %v172 = vand.u32 %v159, 2147483648
    %v173 = vor.u32 1.1754944e-38, %v172
    %v174 = vsel %vm171, %v173, %v169
    %v175 = vmul.f32 %v154, %v174
    %v176 = vld [vmem:[#allocation8] sm:$0xff]
    %v177 = vld [vmem:[#allocation8 + $0x8] sm:$0xff]
    %v178 = vld [vmem:[#allocation8 + $0x10] sm:$0xff]
    %v179 = vld [vmem:[#allocation8 + $0x18] sm:$0x1]
    %v180 = vld [vmem:[%s3] sm:$0x1]
    %v182 = vperm.slane %v180, 0
    %vm184 = vcmask 203776
    %v186 = vsel %vm184, %v175, 0
    %vm188 = vcmask 1040384
    %v190 = vsel %vm188, %v179, 0
    %192 = vmatpush.msra.mxu0 0.0
    %193 = vmatpush.msra.mxu0 0.0
    %194 = vmatpush.msra.mxu0 0.0
    %195 = vmatpush.msra.mxu0 0.0
    %196 = vmatpush.msra.mxu0 0.0
    %197 = vmatpush.msra.mxu0 0.0
    %198 = vmatpush.msra.mxu0 0.0
    %199 = vmatpush.msra.mxu0 0.0
    %200 = vmatpush.msra.mxu0 0.0
    %201 = vmatpush.msra.mxu0 0.0
    %202 = vmatpush.msra.mxu0 0.0
    %203 = vmatpush.msra.mxu0 0.0
    %204 = vmatpush.msra.mxu0 %v190
    %205 = vmatpush.msra.mxu0 %v178
    %206 = vmatpush.msra.mxu0 %v177
    %207 = vmatpush.msra.mxu0 %v176
    %208 = vmatmul.f32.gmra.mxu0 %v186
    %v209 = vpop.f32.mrf.mxu0
    %v210 = vadd.f32 %v182, %v209
    %211 = vdwg.mxu0
    %v212 = vmax.f32 %v210, 0.0
    %v213 = vld [vmem:[%s4] sm:$0x1]
    %v215 = vperm.slane %v213, 0
    %v217 = vmul.f32 %v212, %v215
    %vm218 = vcmask 261120
    %v219 = vsel %vm218, %v217, 0.0
    %220 = vadd.xlane.f32.xlu0 %v219
    %v221 = vpop.xlane.xlu0 %220
    %s222 = sld [smem:[#allocation2]]
    %v223 = vstv %s222
    %v224 = vadd.f32 %v221, %v223
    %v225 = vxor.u32 %v224, 2147483648
    %v226 = vmul.f32 %v225, 1.442695
    %v227 = vpow.pop %v226
    %v228 = vadd.f32 %v227, 1.0
    %v229 = vrcp.pop %v228
    %v230 = vmul.f32 %v228, %v229
    %v231 = vsub.f32 1.0, %v230
    %v232 = vmul.f32 %v229, %v231
    %v233 = vadd.f32 %v229, %v232
    %vm234 = vweird.f32 %v228
    %vm235 = vweird.f32 %v229
    %vm236 = vmor %vm234, %vm235
    %v237 = vsel %vm236, %v229, %v233
    %v238 = vand.u32 2147483647, %v228
    %vm239 = vcmp.eq.f32.partialorder %v238, 8.507059e+37
    %v240 = vand.u32 %v228, 2147483648
    %v241 = vor.u32 1.1754944e-38, %v240
    %v242 = vsel %vm239, %v241, %v237
    %v243 = vmul.f32 1.0, %v242
    %v245 = vperm.slane %v243, %v72
    %vm247 = vcmask 57344
    %248 = vst.msk [vmem:[#allocation9] sm:$0x1] %vm247, %v245
    // Predicated region
    $region38: #{tpu_custom_call.1} parent=1 // pred_check
      _
    $region39: #{tpu_custom_call.1} parent=1 // pred_check_branch
      %250 = sbr.rel (0) target = $region41
    $region40: #{tpu_custom_call.1} parent=1 // pred_region
      %252 = vsyncadd [#allocation5], 0
      %s254 = sshll.u32 [#allocation9], 4
      %s255 = int_to_ptr.vmem [resolvable:$true] %s254
      %s256 = sshll.u32 %s6, 4
      %s257 = int_to_ptr.hbm [resolvable:$true] %s256
      %259 = dma.vmem_to_hbm [thread:$0]  %s255, 16, %s257, [#allocation5]
    $region41: #{tpu_custom_call.1} parent=1 // pred_fallthru
      _
    // Predicated region
    $region42: #{tpu_custom_call.1} parent=1 // pred_check
      _
    $region43: #{tpu_custom_call.1} parent=1 // pred_check_branch
      %261 = sbr.rel (0) target = $region45
    $region44: #{tpu_custom_call.1} parent=1 // pred_region
      %263 = dma.done [#allocation5], 16
    $region45: #{tpu_custom_call.1} parent=1 // pred_fallthru
      _
    %264 = vsyncpa [#allocation4], 1
    %265 = vsyncpa [#allocation7], 1
    %266 = vsyncpa [#allocation5], 1

</llo_original>
